<compile_context>
chip_gen: v6e
topology: v6e:2x2x1
jax: 0.10.0
libtpu: 0.0.40
codegen_flags: <defaults>
</compile_context>

<pallas_src>
import jax
import jax.numpy as jnp
from jax.experimental import pallas as pl
from jax.experimental.pallas import tpu as pltpu

SUBLANE = 8


def make_discriminator2_kernel(slope: float):
    def kernel(z_ref, agg_ref, wz_ref, w2a_ref, bf_ref, w3_ref, b3_ref, out_ref):
        # Fused layers 1+2 on the MXU: in-kernel bf16 casts, f32 accumulation.
        h = jnp.dot(z_ref[...].astype(jnp.bfloat16), wz_ref[...],
                    preferred_element_type=jnp.float32)
        h = h + jnp.dot(agg_ref[...].astype(jnp.bfloat16), w2a_ref[...],
                        preferred_element_type=jnp.float32)
        h = h + bf_ref[...]
        # LeakyReLU in f32 (VPU).
        h = jnp.where(h > 0, h, slope * h)
        # Final Linear(512 -> 1) off the MXU: f32 VPU multiply + XLU lane-reduce.
        o = jnp.sum(h * w3_ref[...], axis=-1, keepdims=True) + b3_ref[...]
        out_ref[...] = jax.nn.sigmoid(o)          # [tb, 1] store (4 B/row total)
    return kernel


def _choose_batch_tiling(B: int, block_b: int):
    """Pick (tile_rows, n_tiles).

    Tiles are a multiple of 8 rows (sublane) unless a single full-extent block
    is used.  Prefers an even tile count >= 2 so v7x's two TensorCores both get
    work under `parallel` dimension semantics.  The last tile may run past B;
    Pallas masks the out-of-bounds rows (no wrapper padding needed).
    """
    if B <= 2 * SUBLANE:
        return B, 1                                   # single full-extent block
    n_tiles = max(2, pl.cdiv(B, block_b))
    if n_tiles % 2:
        n_tiles += 1                                  # even tile count (dual TC)
    tb = pl.cdiv(B, n_tiles)
    tb = pl.cdiv(tb, SUBLANE) * SUBLANE               # round up to sublane mult
    n_tiles = pl.cdiv(B, tb)                          # actual grid after rounding
    return tb, n_tiles


def discriminator2_forward(z, agg_x, params, slope, *, block_b=1024):
    """z: [B, z_dim] f32, agg_x: [B, agg_dim] f32 -> [B, 1] f32."""
    w1, b1, w2, b2, w3, b3 = params
    B, z_dim = z.shape
    agg_dim = agg_x.shape[1]
    hidden = w2.shape[1]

    # ---- host-side algebraic fusion (exact, in f32) ----
    w2_z = w2[:agg_dim, :]                          # rows applied to z_proj
    w2_a = w2[agg_dim:, :]                          # rows applied to agg_x
    w_z_b = (w1 @ w2_z).astype(jnp.bfloat16)        # [z_dim, 512]  (layer 1 folded in)
    w2_a_b = w2_a.astype(jnp.bfloat16)              # [agg_dim, 512]
    b_f = (b1 @ w2_z + b2).astype(jnp.float32)      # [1, 512]      (b1 folded in)
    w3_row = w3.reshape(1, hidden).astype(jnp.float32)   # [1, 512] row for VPU/XLU head
    b3_s = b3.reshape(1, 1).astype(jnp.float32)          # [1, 1]

    # ---- batch tiling: activations/output tile over B, weights resident ----
    tb, n_tiles = _choose_batch_tiling(B, block_b)

    resident = lambda shape: pl.BlockSpec(shape, lambda i: (0, 0))

    out = pl.pallas_call(
        make_discriminator2_kernel(slope),
        out_shape=jax.ShapeDtypeStruct((B, 1), jnp.float32),
        grid=(n_tiles,),
        in_specs=[
            pl.BlockSpec((tb, z_dim), lambda i: (i, 0)),     # z tile (f32)
            pl.BlockSpec((tb, agg_dim), lambda i: (i, 0)),   # agg_x tile (f32)
            resident((z_dim, hidden)),                       # fused W_z (bf16)
            resident((agg_dim, hidden)),                     # W2[agg:] (bf16)
            resident((1, hidden)),                           # fused bias (f32)
            resident((1, hidden)),                           # W3 as row (f32)
            resident((1, 1)),                                # b3 (f32)
        ],
        out_specs=pl.BlockSpec((tb, 1), lambda i: (i, 0)),
        compiler_params=pltpu.CompilerParams(
            dimension_semantics=("parallel",)),
    )(z, agg_x, w_z_b, w2_a_b, b_f, w3_row, b3_s)

    # TODO(synk): PyTorch's .squeeze() returns shape (1,) when B == 1; we always return (B, 1).
    return out


def init_params(key, z_dim, agg_dim):
    """Synthetic init mimicking weights_init: W ~ N(0, 0.02), b = 0.
    Weights stored as [in, out] (pre-transposed PyTorch layout)."""
    k1, k2, k3 = jax.random.split(key, 3)
    w1 = 0.02 * jax.random.normal(k1, (z_dim, agg_dim), jnp.float32)
    b1 = jnp.zeros((1, agg_dim), jnp.float32)
    w2 = 0.02 * jax.random.normal(k2, (agg_dim * 2, 512), jnp.float32)
    b2 = jnp.zeros((1, 512), jnp.float32)
    w3 = 0.02 * jax.random.normal(k3, (512, 1), jnp.float32)
    b3 = jnp.zeros((1, 1), jnp.float32)
    return (w1, b1, w2, b2, w3, b3)


def reference_forward(z, agg_x, params, slope):
    """Pure-JAX f32 reference with the original (un-fused) math."""
    w1, b1, w2, b2, w3, b3 = params
    zp = z @ w1 + b1
    joint = jnp.concatenate([zp, agg_x], axis=1)
    h = joint @ w2 + b2
    h = jnp.where(h > 0, h, slope * h)
    return jax.nn.sigmoid(h @ w3 + b3)


if __name__ == "__main__":
    z_dim = 32
    agg_dim = 64
    slope = 0.2

    key = jax.random.PRNGKey(0)
    kp = jax.random.fold_in(key, 1234)
    params = init_params(kp, z_dim, agg_dim)

    def check(B, block_b=1024):
        kz, kx = jax.random.split(jax.random.fold_in(key, B))
        z = jax.random.normal(kz, (B, z_dim), jnp.float32)
        agg_x = jax.random.normal(kx, (B, agg_dim), jnp.float32)
        out = jax.block_until_ready(
            discriminator2_forward(z, agg_x, params, slope, block_b=block_b))
        ref = reference_forward(z, agg_x, params, slope)
        assert out.shape == (B, 1), f"B={B}: got shape {out.shape}"
        err = jnp.max(jnp.abs(out - ref))
        assert jnp.allclose(out, ref, atol=1e-2, rtol=1e-2), \
            f"B={B}: max err {err}"

    check(8)     # single full-extent block
    check(384)   # 2 even tiles of 192 rows, exact fit
    check(300)   # 2 tiles of 152 rows, ragged tail masked by Pallas (no pad)

    print("KERNEL_OK")
</pallas_src>

<mosaic_0001>
module attributes {stable_mosaic.version = 11 : i64} {
  func.func @kernel(%arg0: i32, %arg1: memref<8x32xf32, #tpu.memory_space<vmem>>, %arg2: memref<8x64xf32, #tpu.memory_space<vmem>>, %arg3: memref<32x512xbf16, #tpu.memory_space<vmem>>, %arg4: memref<64x512xbf16, #tpu.memory_space<vmem>>, %arg5: memref<1x512xf32, #tpu.memory_space<vmem>>, %arg6: memref<1x512xf32, #tpu.memory_space<vmem>>, %arg7: memref<1x1xf32, #tpu.memory_space<vmem>>, %arg8: memref<8x1xf32, #tpu.memory_space<vmem>>) attributes {dimension_semantics = [#tpu.dimension_semantics<parallel>], iteration_bounds = array<i64: 1>, scalar_prefetch = 0 : i64, scratch_operands = 0 : i64, tpu.core_type = #tpu.core_type<tc>, window_params = [{transform_indices = @transform_0, window_bounds = array<i64: 8, 32>}, {transform_indices = @transform_1, window_bounds = array<i64: 8, 64>}, {pipeline_mode = #tpu.pipeline_mode<synchronous>, transform_indices = @transform_2, window_bounds = array<i64: 32, 512>}, {pipeline_mode = #tpu.pipeline_mode<synchronous>, transform_indices = @transform_3, window_bounds = array<i64: 64, 512>}, {pipeline_mode = #tpu.pipeline_mode<synchronous>, transform_indices = @transform_4, window_bounds = array<i64: 1, 512>}, {pipeline_mode = #tpu.pipeline_mode<synchronous>, transform_indices = @transform_5, window_bounds = array<i64: 1, 512>}, {pipeline_mode = #tpu.pipeline_mode<synchronous>, transform_indices = @transform_6, window_bounds = array<i64: 1, 1>}, {transform_indices = @transform_7, window_bounds = array<i64: 8, 1>}]} {
    %c0 = arith.constant 0 : index
    %c0_0 = arith.constant 0 : index
    %0 = vector.load %arg1[%c0, %c0_0] : memref<8x32xf32, #tpu.memory_space<vmem>>, vector<8x32xf32>
    %1 = arith.truncf %0 : vector<8x32xf32> to vector<8x32xbf16>
    %c0_1 = arith.constant 0 : index
    %c0_2 = arith.constant 0 : index
    %2 = vector.load %arg3[%c0_1, %c0_2] : memref<32x512xbf16, #tpu.memory_space<vmem>>, vector<32x512xbf16>
    %cst = arith.constant dense<0.000000e+00> : vector<8x512xf32>
    %3 = tpu.matmul %1, %2, %cst {dimension_numbers = #tpu.dot_dimension_numbers<[1], [0], [0], [1], [0, 0, 1, 1], [], []>} : vector<8x32xbf16>, vector<32x512xbf16>, vector<8x512xf32> -> vector<8x512xf32>
    %c0_3 = arith.constant 0 : index
    %c0_4 = arith.constant 0 : index
    %4 = vector.load %arg2[%c0_3, %c0_4] : memref<8x64xf32, #tpu.memory_space<vmem>>, vector<8x64xf32>
    %5 = arith.truncf %4 : vector<8x64xf32> to vector<8x64xbf16>
    %c0_5 = arith.constant 0 : index
    %c0_6 = arith.constant 0 : index
    %6 = vector.load %arg4[%c0_5, %c0_6] : memref<64x512xbf16, #tpu.memory_space<vmem>>, vector<64x512xbf16>
    %cst_7 = arith.constant dense<0.000000e+00> : vector<8x512xf32>
    %7 = tpu.matmul %5, %6, %cst_7 {dimension_numbers = #tpu.dot_dimension_numbers<[1], [0], [0], [1], [0, 0, 1, 1], [], []>} : vector<8x64xbf16>, vector<64x512xbf16>, vector<8x512xf32> -> vector<8x512xf32>
    %8 = arith.addf %3, %7 : vector<8x512xf32>
    %c0_8 = arith.constant 0 : index
    %c0_9 = arith.constant 0 : index
    %9 = vector.load %arg5[%c0_8, %c0_9] : memref<1x512xf32, #tpu.memory_space<vmem>>, vector<1x512xf32>
    %10 = vector.broadcast %9 : vector<1x512xf32> to vector<8x512xf32>
    %11 = arith.addf %8, %10 : vector<8x512xf32>
    %cst_10 = arith.constant 0.000000e+00 : f32
    %12 = vector.broadcast %cst_10 : f32 to vector<8x512xf32>
    %13 = arith.cmpf ogt, %11, %12 : vector<8x512xf32>
    %cst_11 = arith.constant 2.000000e-01 : f32
    %14 = vector.broadcast %cst_11 : f32 to vector<8x512xf32>
    %15 = arith.mulf %14, %11 : vector<8x512xf32>
    %16 = arith.select %13, %11, %15 : vector<8x512xi1>, vector<8x512xf32>
    %c0_12 = arith.constant 0 : index
    %c0_13 = arith.constant 0 : index
    %17 = vector.load %arg6[%c0_12, %c0_13] : memref<1x512xf32, #tpu.memory_space<vmem>>, vector<1x512xf32>
    %18 = vector.broadcast %17 : vector<1x512xf32> to vector<8x512xf32>
    %19 = arith.mulf %16, %18 : vector<8x512xf32>
    %cst_14 = arith.constant dense<0.000000e+00> : vector<8xf32>
    %20 = vector.multi_reduction <add>, %19, %cst_14 [1] : vector<8x512xf32> to vector<8xf32>
    %21 = vector.shape_cast %20 : vector<8xf32> to vector<8x1xf32>
    %c0_15 = arith.constant 0 : index
    %c0_16 = arith.constant 0 : index
    %22 = vector.load %arg7[%c0_15, %c0_16] : memref<1x1xf32, #tpu.memory_space<vmem>>, vector<1x1xf32>
    %23 = vector.broadcast %22 : vector<1x1xf32> to vector<8x1xf32>
    %24 = arith.addf %21, %23 : vector<8x1xf32>
    %25 = arith.negf %24 : vector<8x1xf32>
    %26 = math.exp %25 : vector<8x1xf32>
    %cst_17 = arith.constant 1.000000e+00 : f32
    %27 = vector.broadcast %cst_17 : f32 to vector<8x1xf32>
    %28 = arith.addf %27, %26 : vector<8x1xf32>
    %29 = arith.divf %27, %28 : vector<8x1xf32>
    %c0_18 = arith.constant 0 : index
    %c0_19 = arith.constant 0 : index
    %30 = vector.load %arg8[%c0_18, %c0_19] : memref<8x1xf32, #tpu.memory_space<vmem>>, vector<8x1xf32>
    tpu.vector_store %arg8[%c0_18, %c0_19], %29 {strides = array<i32>} : memref<8x1xf32, #tpu.memory_space<vmem>>, vector<8x1xf32>,
    return
  }
  func.func @transform_0(%arg0: i32) -> (i32, i32) {
    %c0_i32 = arith.constant 0 : i32
    %c0_i32_0 = arith.constant 0 : i32
    return %arg0, %c0_i32 : i32, i32
  }
  func.func @transform_1(%arg0: i32) -> (i32, i32) {
    %c0_i32 = arith.constant 0 : i32
    %c0_i32_0 = arith.constant 0 : i32
    return %arg0, %c0_i32 : i32, i32
  }
  func.func @transform_2(%arg0: i32) -> (i32, i32) {
    %c0_i32 = arith.constant 0 : i32
    %c0_i32_0 = arith.constant 0 : i32
    %c0_i32_1 = arith.constant 0 : i32
    return %c0_i32, %c0_i32_0 : i32, i32
  }
  func.func @transform_3(%arg0: i32) -> (i32, i32) {
    %c0_i32 = arith.constant 0 : i32
    %c0_i32_0 = arith.constant 0 : i32
    %c0_i32_1 = arith.constant 0 : i32
    return %c0_i32, %c0_i32_0 : i32, i32
  }
  func.func @transform_4(%arg0: i32) -> (i32, i32) {
    %c0_i32 = arith.constant 0 : i32
    %c0_i32_0 = arith.constant 0 : i32
    %c0_i32_1 = arith.constant 0 : i32
    return %c0_i32, %c0_i32_0 : i32, i32
  }
  func.func @transform_5(%arg0: i32) -> (i32, i32) {
    %c0_i32 = arith.constant 0 : i32
    %c0_i32_0 = arith.constant 0 : i32
    %c0_i32_1 = arith.constant 0 : i32
    return %c0_i32, %c0_i32_0 : i32, i32
  }
  func.func @transform_6(%arg0: i32) -> (i32, i32) {
    %c0_i32 = arith.constant 0 : i32
    %c0_i32_0 = arith.constant 0 : i32
    %c0_i32_1 = arith.constant 0 : i32
    return %c0_i32, %c0_i32_0 : i32, i32
  }
  func.func @transform_7(%arg0: i32) -> (i32, i32) {
    %c0_i32 = arith.constant 0 : i32
    %c0_i32_0 = arith.constant 0 : i32
    return %arg0, %c0_i32 : i32, i32
  }
}

</mosaic_0001>

<llo_original>
// kernel: tpu_custom_call.1
$region0: #{tpu_custom_call.1}
  #allocation0 [shape = 'u32[]', space=smem, size = 0x4, offset = 0x4, fixed_abs, tag = 'smem constant byte address 0x4 - core index']
  #allocation1 [shape = 'u32[144,128]{1,0:T(1,128)}', space=vmem, size = 0x12000, scoped, tag = 'internal scratch']
  #allocation2 [shape = 'f32[1,1]{1,0:T(1,128)S(1)}', space=vmem, size = 0x200, scoped, tag = 'scoped memory for tpu_custom_call.1']
  %s0 = inlined_call_operand.hbm [shape: f32[8,32], index: 0, kind: input, shape index: {}]
  %s1 = inlined_call_operand.hbm [shape: f32[8,64], index: 1, kind: input, shape index: {}]
  %s2 = inlined_call_operand.hbm [shape: bf16[32,512], index: 2, kind: input, shape index: {}]
  %s3 = inlined_call_operand.hbm [shape: bf16[64,512], index: 3, kind: input, shape index: {}]
  %s4 = inlined_call_operand.vmem [shape: f32[1,512], index: 4, kind: input, shape index: {}]
  %s5 = inlined_call_operand.vmem [shape: f32[1,512], index: 5, kind: input, shape index: {}]
  %s6 = inlined_call_operand.<no memory space> [shape: f32[1,1], index: 6, kind: input, shape index: {}]
  %s7 = inlined_call_operand.vmem [shape: f32[8,1], index: 7, kind: output, shape index: {}]
  %s8 = sld [smem:[#allocation0]]
  $region54: #{tpu_custom_call.1} parent=0
    _
  %s10 = ssub.s32 1, %s8
  %s11 = scalar_select 0, %s10, %s8
  %v12 = vstv %s6
  %13 = vst [vmem:[#allocation2] sm:$0x1] %v12
  $region1: #{tpu_custom_call.1} parent=0
    #allocation3 [shape = 'u8[4096]{0}', space=vmem, size = 0x1000, scoped, tag = 'input window, operand 0, single buffered']
    #allocation4 [shape = 's32[1]{0}', space=sflag, size = 0x4, scoped, tag = 'scoped memory for tpu_custom_call.1']
    #allocation5 [shape = 'u8[4096]{0}', space=vmem, size = 0x1000, scoped, tag = 'input window, operand 1, single buffered']
    #allocation6 [shape = 's32[1]{0}', space=sflag, size = 0x4, scoped, tag = 'scoped memory for tpu_custom_call.1']
    #allocation7 [shape = 'u8[32768]{0}', space=vmem, size = 0x8000, scoped, tag = 'input window, operand 2, single buffered']
    #allocation8 [shape = 'u8[65536]{0}', space=vmem, size = 0x10000, scoped, tag = 'input window, operand 3, single buffered']
    #allocation9 [shape = 's32[1]{0}', space=sflag, size = 0x4, scoped, tag = 'scoped memory for tpu_custom_call.1']
    %14 = vsyncpa [#allocation4], 0
    %15 = vsyncpa [#allocation6], 0
    %16 = vsyncpa [#allocation9], 0
    // Predicated region
    $region2: #{tpu_custom_call.1} parent=1 // pred_check
      _
    $region3: #{tpu_custom_call.1} parent=1 // pred_check_branch
      %18 = sbr.rel (0) target = $region5
    $region4: #{tpu_custom_call.1} parent=1 // pred_region
      %s20 = ssub.s32 128, 128
      %21 = vsyncadd [#allocation4], %s20
      %s23 = sshll.u32 [#allocation3], 4
      %s24 = int_to_ptr.vmem [resolvable:$true] %s23
      %26 = dma.hbm_to_vmem [thread:$0]  %s0, 128, %s24, [#allocation4]
    $region5: #{tpu_custom_call.1} parent=1 // pred_fallthru
      _
    // Predicated region
    $region6: #{tpu_custom_call.1} parent=1 // pred_check
      _
    $region7: #{tpu_custom_call.1} parent=1 // pred_check_branch
      %28 = sbr.rel (0) target = $region9
    $region8: #{tpu_custom_call.1} parent=1 // pred_region
      %s30 = ssub.s32 128, 128
      %31 = vsyncadd [#allocation6], %s30
      %s33 = sshll.u32 [#allocation5], 4
      %s34 = int_to_ptr.vmem [resolvable:$true] %s33
      %36 = dma.hbm_to_vmem [thread:$0]  %s1, 128, %s34, [#allocation6]
    $region9: #{tpu_custom_call.1} parent=1 // pred_fallthru
      _
    // Predicated region
    $region10: #{tpu_custom_call.1} parent=1 // pred_check
      _
    $region11: #{tpu_custom_call.1} parent=1 // pred_check_branch
      %38 = sbr.rel (0) target = $region13
    $region12: #{tpu_custom_call.1} parent=1 // pred_region
      %s40 = ssub.s32 1024, 1024
      %41 = vsyncadd [#allocation6], %s40
      %s42 = sshll.u32 [#allocation7], 4
      %s43 = int_to_ptr.vmem [resolvable:$true] %s42
      %48 = dma.hbm_to_vmem [thread:$0]  %s2, 1024, %s43, [#allocation6], 256, 256, 16
    $region13: #{tpu_custom_call.1} parent=1 // pred_fallthru
      _
    // Predicated region
    $region14: #{tpu_custom_call.1} parent=1 // pred_check
      _
    $region15: #{tpu_custom_call.1} parent=1 // pred_check_branch
      %50 = sbr.rel (0) target = $region17
    $region16: #{tpu_custom_call.1} parent=1 // pred_region
      %s52 = ssub.s32 2048, 2048
      %53 = vsyncadd [#allocation9], %s52
      %s54 = sshll.u32 [#allocation8], 4
      %s55 = int_to_ptr.vmem [resolvable:$true] %s54
      %60 = dma.hbm_to_vmem [thread:$0]  %s3, 2048, %s55, [#allocation9], 256, 256, 16
    $region17: #{tpu_custom_call.1} parent=1 // pred_fallthru
      _
    // Predicated region
    $region18: #{tpu_custom_call.1} parent=1 // pred_check
      _
    $region19: #{tpu_custom_call.1} parent=1 // pred_check_branch
      %62 = sbr.rel (0) target = $region21
    $region20: #{tpu_custom_call.1} parent=1 // pred_region
      _
    $region21: #{tpu_custom_call.1} parent=1 // pred_fallthru
      _
    // Predicated region
    $region22: #{tpu_custom_call.1} parent=1 // pred_check
      _
    $region23: #{tpu_custom_call.1} parent=1 // pred_check_branch
      %64 = sbr.rel (0) target = $region25
    $region24: #{tpu_custom_call.1} parent=1 // pred_region
      _
    $region25: #{tpu_custom_call.1} parent=1 // pred_fallthru
      _
    // Predicated region
    $region26: #{tpu_custom_call.1} parent=1 // pred_check
      _
    $region27: #{tpu_custom_call.1} parent=1 // pred_check_branch
      %66 = sbr.rel (0) target = $region29
    $region28: #{tpu_custom_call.1} parent=1 // pred_region
      _
    $region29: #{tpu_custom_call.1} parent=1 // pred_fallthru
      _
    // Predicated region
    $region30: #{tpu_custom_call.1} parent=1 // pred_check
      _
    $region31: #{tpu_custom_call.1} parent=1 // pred_check_branch
      %68 = sbr.rel (0) target = $region33
    $region32: #{tpu_custom_call.1} parent=1 // pred_region
      %69 = dma.done [#allocation4], 128
    $region33: #{tpu_custom_call.1} parent=1 // pred_fallthru
      _
    // Predicated region
    $region34: #{tpu_custom_call.1} parent=1 // pred_check
      _
    $region35: #{tpu_custom_call.1} parent=1 // pred_check_branch
      %71 = sbr.rel (0) target = $region37
    $region36: #{tpu_custom_call.1} parent=1 // pred_region
      %72 = dma.done [#allocation6], 128
    $region37: #{tpu_custom_call.1} parent=1 // pred_fallthru
      _
    // Predicated region
    $region38: #{tpu_custom_call.1} parent=1 // pred_check
      _
    $region39: #{tpu_custom_call.1} parent=1 // pred_check_branch
      %74 = sbr.rel (0) target = $region41
    $region40: #{tpu_custom_call.1} parent=1 // pred_region
      %75 = dma.done [#allocation6], 1024
    $region41: #{tpu_custom_call.1} parent=1 // pred_fallthru
      _
    // Predicated region
    $region42: #{tpu_custom_call.1} parent=1 // pred_check
      _
    $region43: #{tpu_custom_call.1} parent=1 // pred_check_branch
      %77 = sbr.rel (0) target = $region45
    $region44: #{tpu_custom_call.1} parent=1 // pred_region
      %78 = dma.done [#allocation9], 2048
    $region45: #{tpu_custom_call.1} parent=1 // pred_fallthru
      _
    %v80 = vld [vmem:[#allocation3] sm:$0xff]
    %v81 = vpack.c.bf16 %v80, %v80
    %v82 = vld [vmem:[#allocation7] sm:$0xff]
    %v83 = vld [vmem:[#allocation7 + $0x8] sm:$0xff]
    %v84 = vld [vmem:[#allocation7 + $0x10] sm:$0xff]
    %v85 = vld [vmem:[#allocation7 + $0x18] sm:$0xff]
    %v86 = vld [vmem:[#allocation7 + $0x20] sm:$0xff]
    %v87 = vld [vmem:[#allocation7 + $0x28] sm:$0xff]
    %v88 = vld [vmem:[#allocation7 + $0x30] sm:$0xff]
    %v89 = vld [vmem:[#allocation7 + $0x38] sm:$0xff]
    %v90 = vld [vmem:[#allocation5] sm:$0xff]
    %v91 = vpack.c.bf16 %v90, %v90
    %v92 = vld [vmem:[#allocation8] sm:$0xff]
    %v93 = vld [vmem:[#allocation8 + $0x8] sm:$0xff]
    %v94 = vld [vmem:[#allocation8 + $0x10] sm:$0xff]
    %v95 = vld [vmem:[#allocation8 + $0x18] sm:$0xff]
    %v96 = vld [vmem:[#allocation8 + $0x20] sm:$0xff]
    %v97 = vld [vmem:[#allocation8 + $0x28] sm:$0xff]
    %v98 = vld [vmem:[#allocation8 + $0x30] sm:$0xff]
    %v99 = vld [vmem:[#allocation8 + $0x38] sm:$0xff]
    %v100 = vld [vmem:[#allocation8 + $0x40] sm:$0xff]
    %v101 = vld [vmem:[#allocation8 + $0x48] sm:$0xff]
    %v102 = vld [vmem:[#allocation8 + $0x50] sm:$0xff]
    %v103 = vld [vmem:[#allocation8 + $0x58] sm:$0xff]
    %v104 = vld [vmem:[#allocation8 + $0x60] sm:$0xff]
    %v105 = vld [vmem:[#allocation8 + $0x68] sm:$0xff]
    %v106 = vld [vmem:[#allocation8 + $0x70] sm:$0xff]
    %v107 = vld [vmem:[#allocation8 + $0x78] sm:$0xff]
    %v124 = vunpack.c.l.b16 %v92
    %v125 = vunpack.c.h.b16 %v92
    %v126 = vunpack.c.l.b16 %v93
    %v127 = vunpack.c.h.b16 %v93
    %v128 = vunpack.c.l.b16 %v94
    %v129 = vunpack.c.h.b16 %v94
    %v130 = vunpack.c.l.b16 %v95
    %v131 = vunpack.c.h.b16 %v95
    %v132 = vunpack.c.l.b16 %v96
    %v133 = vunpack.c.h.b16 %v96
    %v134 = vunpack.c.l.b16 %v97
    %v135 = vunpack.c.h.b16 %v97
    %v136 = vunpack.c.l.b16 %v98
    %v137 = vunpack.c.h.b16 %v98
    %v138 = vunpack.c.l.b16 %v99
    %v139 = vunpack.c.h.b16 %v99
    %v140 = vunpack.c.l.b16 %v100
    %v141 = vunpack.c.h.b16 %v100
    %v142 = vunpack.c.l.b16 %v101
    %v143 = vunpack.c.h.b16 %v101
    %v144 = vunpack.c.l.b16 %v102
    %v145 = vunpack.c.h.b16 %v102
    %v146 = vunpack.c.l.b16 %v103
    %v147 = vunpack.c.h.b16 %v103
    %v148 = vunpack.c.l.b16 %v104
    %v149 = vunpack.c.h.b16 %v104
    %v150 = vunpack.c.l.b16 %v105
    %v151 = vunpack.c.h.b16 %v105
    %v152 = vunpack.c.l.b16 %v106
    %v153 = vunpack.c.h.b16 %v106
    %v154 = vunpack.c.l.b16 %v107
    %v155 = vunpack.c.h.b16 %v107
    %v156 = vpack.c.b16 %v128, %v124
    %v157 = vpack.c.b16 %v129, %v125
    %v158 = vpack.c.b16 %v130, %v126
    %v159 = vpack.c.b16 %v131, %v127
    %v160 = vpack.c.b16 %v136, %v132
    %v161 = vpack.c.b16 %v137, %v133
    %v162 = vpack.c.b16 %v138, %v134
    %v163 = vpack.c.b16 %v139, %v135
    %v164 = vpack.c.b16 %v144, %v140
    %v165 = vpack.c.b16 %v145, %v141
    %v166 = vpack.c.b16 %v146, %v142
    %v167 = vpack.c.b16 %v147, %v143
    %v168 = vpack.c.b16 %v152, %v148
    %v169 = vpack.c.b16 %v153, %v149
    %v170 = vpack.c.b16 %v154, %v150
    %v171 = vpack.c.b16 %v155, %v151
    %vm188 = vcmask 523264
    %v190 = vsel %vm188, %v91, 0
    %192 = vmatprep.subr.bf16.mxu0 0
    %193 = vmatpush1.bf16.msra.mxu0 0
    %194 = vmatprep.subr.bf16.mxu0 0
    %195 = vmatpush1.bf16.msra.mxu0 0
    %196 = vmatprep.subr.bf16.mxu0 0
    %197 = vmatpush1.bf16.msra.mxu0 0
    %198 = vmatprep.subr.bf16.mxu0 0
    %199 = vmatpush1.bf16.msra.mxu0 0
    %200 = vmatprep.subr.bf16.mxu0 %v169
    %201 = vmatpush1.bf16.msra.mxu0 %v168
    %202 = vmatprep.subr.bf16.mxu0 %v165
    %203 = vmatpush1.bf16.msra.mxu0 %v164
    %204 = vmatprep.subr.bf16.mxu0 %v161
    %205 = vmatpush1.bf16.msra.mxu0 %v160
    %206 = vmatprep.subr.bf16.mxu0 %v157
    %207 = vmatpush1.bf16.msra.mxu0 %v156
    %208 = vmatprep.subr.bf16.mxu0 0
    %209 = vmatpush2.bf16.msra.mxu0 0
    %210 = vmatprep.subr.bf16.mxu0 0
    %211 = vmatpush2.bf16.msra.mxu0 0
    %212 = vmatprep.subr.bf16.mxu0 0
    %213 = vmatpush2.bf16.msra.mxu0 0
    %214 = vmatprep.subr.bf16.mxu0 0
    %215 = vmatpush2.bf16.msra.mxu0 0
    %216 = vmatprep.subr.bf16.mxu0 0
    %217 = vmatpush2.bf16.msra.mxu0 0
    %218 = vmatprep.subr.bf16.mxu0 0
    %219 = vmatpush2.bf16.msra.mxu0 0
    %220 = vmatprep.subr.bf16.mxu0 0
    %221 = vmatpush2.bf16.msra.mxu0 0
    %222 = vmatprep.subr.bf16.mxu0 0
    %223 = vmatpush2.bf16.msra.mxu0 0
    %224 = vmatprep.mubr.bf16.mxu0 0
    %225 = vmatmul.mubr.bf16.gmra.mxu0 %v190
    %v226 = vpop.f32.mrf.mxu0
    %v227 = vadd.f32 0.0, %v226
    %v228 = vpop.f32.mrf.mxu0
    %v229 = vadd.f32 0.0, %v228
    %v230 = vpop.f32.mrf.mxu0
    %v231 = vpop.f32.mrf.mxu0
    %232 = vdwg.mxu0
    %233 = vmatprep.subr.bf16.mxu0 0
    %234 = vmatpush1.bf16.msra.mxu0 0
    %235 = vmatprep.subr.bf16.mxu0 0
    %236 = vmatpush1.bf16.msra.mxu0 0
    %237 = vmatprep.subr.bf16.mxu0 0
    %238 = vmatpush1.bf16.msra.mxu0 0
    %239 = vmatprep.subr.bf16.mxu0 0
    %240 = vmatpush1.bf16.msra.mxu0 0
    %241 = vmatprep.subr.bf16.mxu0 %v171
    %242 = vmatpush1.bf16.msra.mxu0 %v170
    %243 = vmatprep.subr.bf16.mxu0 %v167
    %244 = vmatpush1.bf16.msra.mxu0 %v166
    %245 = vmatprep.subr.bf16.mxu0 %v163
    %246 = vmatpush1.bf16.msra.mxu0 %v162
    %247 = vmatprep.subr.bf16.mxu0 %v159
    %248 = vmatpush1.bf16.msra.mxu0 %v158
    %249 = vmatprep.subr.bf16.mxu0 0
    %250 = vmatpush2.bf16.msra.mxu0 0
    %251 = vmatprep.subr.bf16.mxu0 0
    %252 = vmatpush2.bf16.msra.mxu0 0
    %253 = vmatprep.subr.bf16.mxu0 0
    %254 = vmatpush2.bf16.msra.mxu0 0
    %255 = vmatprep.subr.bf16.mxu0 0
    %256 = vmatpush2.bf16.msra.mxu0 0
    %257 = vmatprep.subr.bf16.mxu0 0
    %258 = vmatpush2.bf16.msra.mxu0 0
    %259 = vmatprep.subr.bf16.mxu0 0
    %260 = vmatpush2.bf16.msra.mxu0 0
    %261 = vmatprep.subr.bf16.mxu0 0
    %262 = vmatpush2.bf16.msra.mxu0 0
    %263 = vmatprep.subr.bf16.mxu0 0
    %264 = vmatpush2.bf16.msra.mxu0 0
    %265 = vmatprep.mubr.bf16.mxu0 0
    %266 = vmatmul.mubr.bf16.gmra.mxu0 %v190
    %v267 = vpop.f32.mrf.mxu0
    %v268 = vadd.f32 0.0, %v267
    %v269 = vpop.f32.mrf.mxu0
    %v270 = vadd.f32 0.0, %v269
    %v271 = vpop.f32.mrf.mxu0
    %v272 = vpop.f32.mrf.mxu0
    %273 = vdwg.mxu0
    %v282 = vunpack.c.l.b16 %v82
    %v283 = vunpack.c.h.b16 %v82
    %v284 = vunpack.c.l.b16 %v83
    %v285 = vunpack.c.h.b16 %v83
    %v286 = vunpack.c.l.b16 %v84
    %v287 = vunpack.c.h.b16 %v84
    %v288 = vunpack.c.l.b16 %v85
    %v289 = vunpack.c.h.b16 %v85
    %v290 = vunpack.c.l.b16 %v86
    %v291 = vunpack.c.h.b16 %v86
    %v292 = vunpack.c.l.b16 %v87
    %v293 = vunpack.c.h.b16 %v87
    %v294 = vunpack.c.l.b16 %v88
    %v295 = vunpack.c.h.b16 %v88
    %v296 = vunpack.c.l.b16 %v89
    %v297 = vunpack.c.h.b16 %v89
    %v298 = vpack.c.b16 %v286, %v282
    %v299 = vpack.c.b16 %v287, %v283
    %v300 = vpack.c.b16 %v288, %v284
    %v301 = vpack.c.b16 %v289, %v285
    %v302 = vpack.c.b16 %v294, %v290
    %v303 = vpack.c.b16 %v295, %v291
    %v304 = vpack.c.b16 %v296, %v292
    %v305 = vpack.c.b16 %v297, %v293
    %vm314 = vcmask 261120
    %v316 = vsel %vm314, %v81, 0
    %318 = vmatprep.subr.bf16.mxu0 0
    %319 = vmatpush1.bf16.msra.mxu0 0
    %320 = vmatprep.subr.bf16.mxu0 0
    %321 = vmatpush1.bf16.msra.mxu0 0
    %322 = vmatprep.subr.bf16.mxu0 0
    %323 = vmatpush1.bf16.msra.mxu0 0
    %324 = vmatprep.subr.bf16.mxu0 0
    %325 = vmatpush1.bf16.msra.mxu0 0
    %326 = vmatprep.subr.bf16.mxu0 0
    %327 = vmatpush1.bf16.msra.mxu0 0
    %328 = vmatprep.subr.bf16.mxu0 0
    %329 = vmatpush1.bf16.msra.mxu0 0
    %330 = vmatprep.subr.bf16.mxu0 %v303
    %331 = vmatpush1.bf16.msra.mxu0 %v302
    %332 = vmatprep.subr.bf16.mxu0 %v299
    %333 = vmatpush1.bf16.msra.mxu0 %v298
    %334 = vmatprep.subr.bf16.mxu0 0
    %335 = vmatpush2.bf16.msra.mxu0 0
    %336 = vmatprep.subr.bf16.mxu0 0
    %337 = vmatpush2.bf16.msra.mxu0 0
    %338 = vmatprep.subr.bf16.mxu0 0
    %339 = vmatpush2.bf16.msra.mxu0 0
    %340 = vmatprep.subr.bf16.mxu0 0
    %341 = vmatpush2.bf16.msra.mxu0 0
    %342 = vmatprep.subr.bf16.mxu0 0
    %343 = vmatpush2.bf16.msra.mxu0 0
    %344 = vmatprep.subr.bf16.mxu0 0
    %345 = vmatpush2.bf16.msra.mxu0 0
    %346 = vmatprep.subr.bf16.mxu0 0
    %347 = vmatpush2.bf16.msra.mxu0 0
    %348 = vmatprep.subr.bf16.mxu0 0
    %349 = vmatpush2.bf16.msra.mxu0 0
    %350 = vmatprep.mubr.bf16.mxu0 0
    %351 = vmatmul.mubr.bf16.gmra.mxu0 %v316
    %v352 = vpop.f32.mrf.mxu0
    %v353 = vadd.f32 %v227, %v352
    %v354 = vpop.f32.mrf.mxu0
    %v355 = vadd.f32 %v229, %v354
    %v356 = vpop.f32.mrf.mxu0
    %v357 = vpop.f32.mrf.mxu0
    %358 = vdwg.mxu0
    %359 = vmatprep.subr.bf16.mxu0 0
    %360 = vmatpush1.bf16.msra.mxu0 0
    %361 = vmatprep.subr.bf16.mxu0 0
    %362 = vmatpush1.bf16.msra.mxu0 0
    %363 = vmatprep.subr.bf16.mxu0 0
    %364 = vmatpush1.bf16.msra.mxu0 0
    %365 = vmatprep.subr.bf16.mxu0 0
    %366 = vmatpush1.bf16.msra.mxu0 0
    %367 = vmatprep.subr.bf16.mxu0 0
    %368 = vmatpush1.bf16.msra.mxu0 0
    %369 = vmatprep.subr.bf16.mxu0 0
    %370 = vmatpush1.bf16.msra.mxu0 0
    %371 = vmatprep.subr.bf16.mxu0 %v305
    %372 = vmatpush1.bf16.msra.mxu0 %v304
    %373 = vmatprep.subr.bf16.mxu0 %v301
    %374 = vmatpush1.bf16.msra.mxu0 %v300
    %375 = vmatprep.subr.bf16.mxu0 0
    %376 = vmatpush2.bf16.msra.mxu0 0
    %377 = vmatprep.subr.bf16.mxu0 0
    %378 = vmatpush2.bf16.msra.mxu0 0
    %379 = vmatprep.subr.bf16.mxu0 0
    %380 = vmatpush2.bf16.msra.mxu0 0
    %381 = vmatprep.subr.bf16.mxu0 0
    %382 = vmatpush2.bf16.msra.mxu0 0
    %383 = vmatprep.subr.bf16.mxu0 0
    %384 = vmatpush2.bf16.msra.mxu0 0
    %385 = vmatprep.subr.bf16.mxu0 0
    %386 = vmatpush2.bf16.msra.mxu0 0
    %387 = vmatprep.subr.bf16.mxu0 0
    %388 = vmatpush2.bf16.msra.mxu0 0
    %389 = vmatprep.subr.bf16.mxu0 0
    %390 = vmatpush2.bf16.msra.mxu0 0
    %391 = vmatprep.mubr.bf16.mxu0 0
    %392 = vmatmul.mubr.bf16.gmra.mxu0 %v316
    %v393 = vpop.f32.mrf.mxu0
    %v394 = vadd.f32 %v268, %v393
    %v395 = vpop.f32.mrf.mxu0
    %v396 = vadd.f32 %v270, %v395
    %v397 = vpop.f32.mrf.mxu0
    %v398 = vpop.f32.mrf.mxu0
    %399 = vdwg.mxu0
    %v400 = vld [vmem:[%s4] sm:$0xf]
    %v402 = vlaneseq
    %v403 = vshrl.u32 %v402, 7
    %v404 = vsub.s32 0, %v403
    %v405 = vrot.slane %v400, %v404
    %v406 = vlaneseq
    %v407 = vshrl.u32 %v406, 7
    %v408 = vsub.s32 1, %v407
    %v409 = vrot.slane %v400, %v408
    %v410 = vlaneseq
    %v411 = vshrl.u32 %v410, 7
    %v412 = vsub.s32 2, %v411
    %v413 = vrot.slane %v400, %v412
    %v414 = vlaneseq
    %v415 = vshrl.u32 %v414, 7
    %v416 = vsub.s32 3, %v415
    %v417 = vrot.slane %v400, %v416
    %v422 = vadd.f32 %v353, %v405
    %v423 = vadd.f32 %v355, %v409
    %v424 = vadd.f32 %v394, %v413
    %v425 = vadd.f32 %v396, %v417
    %vm426 = vcmp.gt.f32.partialorder %v422, 0.0
    %vm427 = vcmp.gt.f32.partialorder %v423, 0.0
    %vm428 = vcmp.gt.f32.partialorder %v424, 0.0
    %vm429 = vcmp.gt.f32.partialorder %v425, 0.0
    %v430 = vmul.f32 %v422, 0.2
    %v431 = vmul.f32 %v423, 0.2
    %v432 = vmul.f32 %v424, 0.2
    %v433 = vmul.f32 %v425, 0.2
    %v434 = vsel %vm426, %v422, %v430
    %v435 = vsel %vm427, %v423, %v431
    %v436 = vsel %vm428, %v424, %v432
    %v437 = vsel %vm429, %v425, %v433
    %v438 = vld [vmem:[%s5] sm:$0xf]
    %v440 = vlaneseq
    %v441 = vshrl.u32 %v440, 7
    %v442 = vsub.s32 0, %v441
    %v443 = vrot.slane %v438, %v442
    %v444 = vlaneseq
    %v445 = vshrl.u32 %v444, 7
    %v446 = vsub.s32 1, %v445
    %v447 = vrot.slane %v438, %v446
    %v448 = vlaneseq
    %v449 = vshrl.u32 %v448, 7
    %v450 = vsub.s32 2, %v449
    %v451 = vrot.slane %v438, %v450
    %v452 = vlaneseq
    %v453 = vshrl.u32 %v452, 7
    %v454 = vsub.s32 3, %v453
    %v455 = vrot.slane %v438, %v454
    %v460 = vmul.f32 %v434, %v443
    %v461 = vmul.f32 %v435, %v447
    %v462 = vmul.f32 %v436, %v451
    %v463 = vmul.f32 %v437, %v455
    %v464 = vadd.f32 %v460, %v461
    %v465 = vadd.f32 %v464, %v462
    %v466 = vadd.f32 %v465, %v463
    %467 = vadd.xlane.f32.xlu0 %v466
    %v468 = vpop.xlane.xlu0 %467
    %v469 = vld [vmem:[#allocation2] sm:$0x1]
    %v471 = vlaneseq
    %v472 = vshrl.u32 %v471, 7
    %v473 = vsub.s32 0, %v472
    %v474 = vrot.slane %v469, %v473
    %v476 = vadd.f32 %v468, %v474
    %v477 = vxor.u32 %v476, 2147483648
    %v478 = vmul.f32 %v477, 1.442695
    %v479 = vpow.pop %v478
    %v480 = vadd.f32 %v479, 1.0
    %v481 = vrcp.pop %v480
    %v482 = vmul.f32 1.0, %v481
    %vm483 = vcmask 7168
    %484 = vst.msk [vmem:[%s7] sm:$0xff] %vm483, %v482
    // Predicated region
    $region46: #{tpu_custom_call.1} parent=1 // pred_check
      _
    $region47: #{tpu_custom_call.1} parent=1 // pred_check_branch
      %486 = sbr.rel (0) target = $region49
    $region48: #{tpu_custom_call.1} parent=1 // pred_region
      _
    $region49: #{tpu_custom_call.1} parent=1 // pred_fallthru
      _
    // Predicated region
    $region50: #{tpu_custom_call.1} parent=1 // pred_check
      _
    $region51: #{tpu_custom_call.1} parent=1 // pred_check_branch
      %488 = sbr.rel (0) target = $region53
    $region52: #{tpu_custom_call.1} parent=1 // pred_region
      _
    $region53: #{tpu_custom_call.1} parent=1 // pred_fallthru
      _
    %489 = vsyncpa [#allocation4], 1
    %490 = vsyncpa [#allocation6], 1
    %491 = vsyncpa [#allocation9], 1

</llo_original>
